<compile_context>
chip_gen: v7x
topology: tpu7x:2x2x1
jax: 0.10.0
libtpu: 0.0.40
codegen_flags: <defaults>
</compile_context>

<pallas_src>
import jax
import jax.numpy as jnp
from jax.experimental import pallas as pl
from jax.experimental.pallas import tpu as pltpu

# N:M vector-sparsity hyper-parameters from the reference script.
M_GROUP = 8          # m
N_KEEP = 2           # n
V_VEC = 64           # v (out_features must be a multiple of v)
KEPT_COLS = (0, 2)   # NMVectorSparsifier keep pattern [1,0,1,0,0,0,0,0]


def _round_up(x, mult):
    return (x + mult - 1) // mult * mult


def _nm_column_mask(weight_shape, dtype):
    """Dense mask replicating NMVectorSparsifier.get_random_mask (reference only)."""
    nrows, ncols = weight_shape
    col_in_group = jnp.arange(ncols) % M_GROUP
    keep = (col_in_group == 0) | (col_in_group == 2)
    return jnp.broadcast_to(keep[None, :], (nrows, ncols)).astype(dtype)


def _pick_tk(kc):
    """K-tile: single K step when Kc (rounded to 128) <= 1024, else the
    multiple-of-128 tile <= 1024 with minimal zero-pad slack."""
    kc128 = _round_up(kc, 128)
    if kc128 <= 1024:
        return kc128
    best_tk, best_pad = 1024, None
    for tk in range(1024, 127, -128):
        pad = _round_up(kc128, tk) - kc128
        if best_pad is None or pad < best_pad:
            best_tk, best_pad = tk, pad
            if pad == 0:
                break
    return best_tk


def _pick_tn(n):
    """N-tile: up to 512 wide, lane-dense, and split so the N axis has at
    least 2 parallel blocks when possible (keeps both v7x cores busy)."""
    tn = min(512, _round_up(n, 128))
    n_p = _round_up(n, tn)
    if n_p // tn < 2 and tn > 128:
        tn = _round_up(tn // 2, 128)
    return tn


def prepare_srnm_params(weight, bias, compute_dtype=jnp.bfloat16):
    """One-time parameter prep (analogue of SrnmSpmm.__init__).

    weight: (N, K) dense weight; bias: (N,)
    Returns a dict holding the compacted, transposed, tile-padded weight
    (Kc_p, N_p), the padded bias (1, N_p), and the tile sizes -- so the
    forward path never re-pads or re-copies parameters.
    """
    N, K = weight.shape
    assert K % M_GROUP == 0 and N % V_VEC == 0
    Kc = (K // M_GROUP) * N_KEEP

    # Compact: keep only columns k % 8 in {0, 2}; transpose to (Kc, N).
    w_groups = weight.reshape(N, K // M_GROUP, M_GROUP)
    w_compact = w_groups[:, :, KEPT_COLS].reshape(N, Kc)
    wc_t = jnp.asarray(w_compact.T, dtype=compute_dtype)          # (Kc, N)

    tk = _pick_tk(Kc)
    tn = _pick_tn(N)
    Kc_p = _round_up(Kc, tk)
    N_p = _round_up(N, tn)

    if (Kc_p, N_p) != (Kc, N):
        wc_t = jnp.pad(wc_t, ((0, Kc_p - Kc), (0, N_p - N)))
    b2 = jnp.asarray(bias, jnp.float32).reshape(1, N)
    if N_p != N:
        b2 = jnp.pad(b2, ((0, 0), (0, N_p - N)))

    return {"wt": wc_t, "bias2d": b2,
            "N": N, "K": K, "Kc": Kc, "tn": tn, "tk": tk}


def _linear_kernel_single_k(x_ref, wt_ref, b_ref, o_ref):
    # Single K step: no accumulator scratch, no read-modify-write.
    acc = jnp.dot(x_ref[...], wt_ref[...], preferred_element_type=jnp.float32)
    o_ref[...] = (acc + b_ref[...]).astype(o_ref.dtype)


def _linear_kernel_multi_k(x_ref, wt_ref, b_ref, o_ref, acc_ref):
    # x_ref:  (tm, tk) bf16 compacted activations
    # wt_ref: (tk, tn) bf16 compacted transposed weight
    # b_ref:  (1,  tn) f32 bias
    # acc_ref:(tm, tn) f32 accumulator, resident across the K axis
    k = pl.program_id(2)

    @pl.when(k == 0)
    def _():
        # Bias added exactly once per output tile, as the accumulator init.
        acc_ref[...] = jnp.broadcast_to(b_ref[...], acc_ref.shape)

    acc_ref[...] += jnp.dot(x_ref[...], wt_ref[...],
                            preferred_element_type=jnp.float32)

    @pl.when(k == pl.num_programs(2) - 1)
    def _():
        o_ref[...] = acc_ref[...].astype(o_ref.dtype)


def srnm_spmm_forward(x, params, out_dtype=jnp.bfloat16):
    """Equivalent of SrnmSpmm.forward.

    x:      (..., K) activations
    params: dict from prepare_srnm_params
    returns (..., N) in out_dtype (bf16 by default -- halves store bytes)
    """
    wt, b2 = params["wt"], params["bias2d"]
    N, K, Kc = params["N"], params["K"], params["Kc"]
    tn, tk = params["tn"], params["tk"]
    Kc_p, N_p = wt.shape

    *batch_dims, Kx = x.shape
    assert Kx == K
    x2 = x.reshape(-1, K)
    DM = x2.shape[0]

    # Gather the activation columns matching the kept weight columns
    # (k % 8 in {0, 2}); cast to bf16 FIRST so this pass reads 2 B/elem.
    xc = x2.astype(wt.dtype).reshape(DM, K // M_GROUP, M_GROUP)[:, :, KEPT_COLS]
    xc = xc.reshape(DM, Kc)

    tm = min(512, _round_up(DM, 16))
    DM_p = _round_up(DM, tm)
    if (DM_p, Kc_p) != (DM, Kc):
        xc = jnp.pad(xc, ((0, DM_p - DM), (0, Kc_p - Kc)))

    grid_k = Kc_p // tk
    grid = (DM_p // tm, N_p // tn, grid_k)

    if grid_k == 1:
        kernel = _linear_kernel_single_k
        scratch = []
    else:
        kernel = _linear_kernel_multi_k
        scratch = [pltpu.VMEM((tm, tn), jnp.float32)]

    out = pl.pallas_call(
        kernel,
        out_shape=jax.ShapeDtypeStruct((DM_p, N_p), out_dtype),
        grid_spec=pltpu.PrefetchScalarGridSpec(
            num_scalar_prefetch=0,
            grid=grid,
            in_specs=[
                pl.BlockSpec((tm, tk), lambda i, j, k: (i, k)),
                pl.BlockSpec((tk, tn), lambda i, j, k: (k, j)),
                pl.BlockSpec((1, tn), lambda i, j, k: (0, j)),
            ],
            out_specs=pl.BlockSpec((tm, tn), lambda i, j, k: (i, j)),
            scratch_shapes=scratch,
        ),
        compiler_params=pltpu.CompilerParams(
            dimension_semantics=("parallel", "parallel", "arbitrary"),
            # Tiles (<=512x1024 bf16 inputs, 512x512 f32 acc) stay far under
            # v7x's 64 MiB physical VMEM; 48 MiB leaves headroom on all gens.
            vmem_limit_bytes=48 * 1024 * 1024,
        ),
    )(xc, wt, b2)

    return out[:DM, :N].reshape(*batch_dims, N)


if __name__ == "__main__":
    key = jax.random.PRNGKey(0)
    k_x, k_w, k_b = jax.random.split(key, 3)

    # Small shapes consistent with the module's constraints:
    #   in_features  K = 32  (multiple of m=8)
    #   out_features N = 64  (multiple of v=64)
    #   input (batch=2, seq=8, K=32)
    B, S, K, N = 2, 8, 32, 64

    x = jax.random.normal(k_x, (B, S, K), dtype=jnp.float32)
    # Deterministic nn.Linear-style init: U(-1/sqrt(K), 1/sqrt(K)).
    bound = 1.0 / (K ** 0.5)
    weight = jax.random.uniform(k_w, (N, K), jnp.float32, -bound, bound)
    bias = jax.random.uniform(k_b, (N,), jnp.float32, -bound, bound)

    # One-time parameter prep (compaction + transpose + tile padding), hoisted
    # out of the forward path.
    params = prepare_srnm_params(weight, bias)

    # jit the forward so the activation gather/cast/pad fuses with the kernel.
    fwd = jax.jit(lambda xx: srnm_spmm_forward(xx, params))
    out = jax.block_until_ready(fwd(x))

    # Correctness check against a pure-JAX reference of the same semantics.
    mask = _nm_column_mask(weight.shape, weight.dtype)
    ref_f32 = x @ (weight * mask).T + bias
    # Reference with the same bf16 operand quantization (matmul inputs are bf16).
    x_q = x.astype(jnp.bfloat16).astype(jnp.float32)
    w_q = (weight * mask).astype(jnp.bfloat16).astype(jnp.float32)
    ref_bf16 = x_q @ w_q.T + bias

    out_f32 = out.astype(jnp.float32)
    assert out.shape == (B, S, N)
    assert out.dtype == jnp.bfloat16
    assert jnp.allclose(out_f32, ref_bf16, atol=1e-2, rtol=1e-2)
    assert jnp.allclose(out_f32, ref_f32, atol=5e-2, rtol=5e-2)

    print("KERNEL_OK")
</pallas_src>

<mosaic_0001>
module attributes {stable_mosaic.version = 11 : i64} {
  func.func @_linear_kernel_single_k(%arg0: i32, %arg1: i32, %arg2: i32, %arg3: memref<16x128xbf16, #tpu.memory_space<vmem>>, %arg4: memref<128x128xbf16, #tpu.memory_space<vmem>>, %arg5: memref<1x128xf32, #tpu.memory_space<vmem>>, %arg6: memref<16x128xbf16, #tpu.memory_space<vmem>>) attributes {dimension_semantics = [#tpu.dimension_semantics<parallel>, #tpu.dimension_semantics<parallel>, #tpu.dimension_semantics<arbitrary>], iteration_bounds = array<i64: 1, 1, 1>, scalar_prefetch = 0 : i64, scratch_operands = 0 : i64, tpu.core_type = #tpu.core_type<tc>, window_params = [{transform_indices = @transform_0, window_bounds = array<i64: 16, 128>}, {transform_indices = @transform_1, window_bounds = array<i64: 128, 128>}, {transform_indices = @transform_2, window_bounds = array<i64: 1, 128>}, {transform_indices = @transform_3, window_bounds = array<i64: 16, 128>}]} {
    %c0 = arith.constant 0 : index
    %c0_0 = arith.constant 0 : index
    %0 = vector.load %arg3[%c0, %c0_0] : memref<16x128xbf16, #tpu.memory_space<vmem>>, vector<16x128xbf16>
    %c0_1 = arith.constant 0 : index
    %c0_2 = arith.constant 0 : index
    %1 = vector.load %arg4[%c0_1, %c0_2] : memref<128x128xbf16, #tpu.memory_space<vmem>>, vector<128x128xbf16>
    %cst = arith.constant dense<0.000000e+00> : vector<16x128xf32>
    %2 = tpu.matmul %0, %1, %cst {dimension_numbers = #tpu.dot_dimension_numbers<[1], [0], [0], [1], [0, 0, 1, 1], [], []>} : vector<16x128xbf16>, vector<128x128xbf16>, vector<16x128xf32> -> vector<16x128xf32>
    %c0_3 = arith.constant 0 : index
    %c0_4 = arith.constant 0 : index
    %3 = vector.load %arg5[%c0_3, %c0_4] : memref<1x128xf32, #tpu.memory_space<vmem>>, vector<1x128xf32>
    %4 = vector.broadcast %3 : vector<1x128xf32> to vector<16x128xf32>
    %5 = arith.addf %2, %4 : vector<16x128xf32>
    %6 = arith.truncf %5 : vector<16x128xf32> to vector<16x128xbf16>
    %c0_5 = arith.constant 0 : index
    %c0_6 = arith.constant 0 : index
    %7 = vector.load %arg6[%c0_5, %c0_6] : memref<16x128xbf16, #tpu.memory_space<vmem>>, vector<16x128xbf16>
    tpu.vector_store %arg6[%c0_5, %c0_6], %6 {strides = array<i32>} : memref<16x128xbf16, #tpu.memory_space<vmem>>, vector<16x128xbf16>,
    return
  }
  func.func @transform_0(%arg0: i32, %arg1: i32, %arg2: i32) -> (i32, i32) {
    %c0_i32 = arith.constant 0 : i32
    return %arg0, %arg2 : i32, i32
  }
  func.func @transform_1(%arg0: i32, %arg1: i32, %arg2: i32) -> (i32, i32) {
    %c0_i32 = arith.constant 0 : i32
    return %arg2, %arg1 : i32, i32
  }
  func.func @transform_2(%arg0: i32, %arg1: i32, %arg2: i32) -> (i32, i32) {
    %c0_i32 = arith.constant 0 : i32
    %c0_i32_0 = arith.constant 0 : i32
    return %c0_i32, %arg1 : i32, i32
  }
  func.func @transform_3(%arg0: i32, %arg1: i32, %arg2: i32) -> (i32, i32) {
    %c0_i32 = arith.constant 0 : i32
    return %arg0, %arg1 : i32, i32
  }
}

</mosaic_0001>

<llo_original>
// kernel: _lambda_.1
$region0: #{_lambda_.1}
  #allocation0 [shape = 'u32[]', space=smem, size = 0x4, offset = 0x4, fixed_abs, tag = 'smem constant byte address 0x4 - core index']
  #allocation1 [shape = 'u32[144,128]{1,0:T(1,128)}', space=vmem, size = 0x12000, scoped, tag = 'internal scratch']
  %s0 = inlined_call_operand.vmem [shape: bf16[16,128], index: 0, kind: input, shape index: {}]
  %s1 = inlined_call_operand.vmem [shape: bf16[128,128], index: 1, kind: input, shape index: {}]
  %s2 = inlined_call_operand.vmem [shape: f32[1,128], index: 2, kind: input, shape index: {}]
  %s3 = inlined_call_operand.vmem [shape: bf16[16,128], index: 3, kind: output, shape index: {}]
  %s4 = sld [smem:[#allocation0]]
  $region22: #{_lambda_.1} parent=0
    _
  %s6 = ssub.s32 1, %s4
  %s7 = scalar_select 0, %s6, %s4
  // Predicated region
  $region2: #{_lambda_.1} parent=0 // pred_check
    _
  $region3: #{_lambda_.1} parent=0 // pred_check_branch
    %9 = sbr.rel (0) target = $region5
  $region4: #{_lambda_.1} parent=0 // pred_region
    _
  $region5: #{_lambda_.1} parent=0 // pred_fallthru
    _
  // Predicated region
  $region6: #{_lambda_.1} parent=0 // pred_check
    _
  $region7: #{_lambda_.1} parent=0 // pred_check_branch
    %11 = sbr.rel (0) target = $region9
  $region8: #{_lambda_.1} parent=0 // pred_region
    _
  $region9: #{_lambda_.1} parent=0 // pred_fallthru
    _
  // Predicated region
  $region10: #{_lambda_.1} parent=0 // pred_check
    _
  $region11: #{_lambda_.1} parent=0 // pred_check_branch
    %13 = sbr.rel (0) target = $region13
  $region12: #{_lambda_.1} parent=0 // pred_region
    _
  $region13: #{_lambda_.1} parent=0 // pred_fallthru
    _
  %v15 = vld [vmem:[%s0] sm:$0xf]
  %v16 = vld [vmem:[%s0 + $0x4] sm:$0xf]
  %v17 = vld [vmem:[%s1] sm:$0xf]
  %v18 = vld [vmem:[%s1 + $0x4] sm:$0xf]
  %v19 = vld [vmem:[%s1 + $0x8] sm:$0xf]
  %v20 = vld [vmem:[%s1 + $0xc] sm:$0xf]
  %v21 = vld [vmem:[%s1 + $0x10] sm:$0xf]
  %v22 = vld [vmem:[%s1 + $0x14] sm:$0xf]
  %v23 = vld [vmem:[%s1 + $0x18] sm:$0xf]
  %v24 = vld [vmem:[%s1 + $0x1c] sm:$0xf]
  %v25 = vld [vmem:[%s1 + $0x20] sm:$0xf]
  %v26 = vld [vmem:[%s1 + $0x24] sm:$0xf]
  %v27 = vld [vmem:[%s1 + $0x28] sm:$0xf]
  %v28 = vld [vmem:[%s1 + $0x2c] sm:$0xf]
  %v29 = vld [vmem:[%s1 + $0x30] sm:$0xf]
  %v30 = vld [vmem:[%s1 + $0x34] sm:$0xf]
  %v31 = vld [vmem:[%s1 + $0x38] sm:$0xf]
  %v32 = vld [vmem:[%s1 + $0x3c] sm:$0xf]
  %v33 = vld [vmem:[%s2] sm:$0x1]
  %v35 = vlaneseq
  %v36 = vshrl.u32 %v35, 7
  %v37 = vsub.s32 0, %v36
  %v38 = vrot.slane %v33, %v37
  %v42 = vunpack.c.l.b16 %v15
  %v43 = vunpack.c.l.b16 %v16
  %v44 = vpack.c.b16 %v43, %v42
  %v62 = vunpack.c.l.b16 %v17
  %v63 = vunpack.c.l.b16 %v18
  %v64 = vunpack.c.l.b16 %v19
  %v65 = vunpack.c.l.b16 %v20
  %v66 = vunpack.c.l.b16 %v21
  %v67 = vunpack.c.l.b16 %v22
  %v68 = vunpack.c.l.b16 %v23
  %v69 = vunpack.c.l.b16 %v24
  %v70 = vunpack.c.l.b16 %v25
  %v71 = vunpack.c.l.b16 %v26
  %v72 = vunpack.c.l.b16 %v27
  %v73 = vunpack.c.l.b16 %v28
  %v74 = vunpack.c.l.b16 %v29
  %v75 = vunpack.c.l.b16 %v30
  %v76 = vunpack.c.l.b16 %v31
  %v77 = vunpack.c.l.b16 %v32
  %v78 = vpack.c.b16 %v63, %v62
  %v79 = vpack.c.b16 %v65, %v64
  %v80 = vpack.c.b16 %v67, %v66
  %v81 = vpack.c.b16 %v69, %v68
  %v82 = vpack.c.b16 %v71, %v70
  %v83 = vpack.c.b16 %v73, %v72
  %v84 = vpack.c.b16 %v75, %v74
  %v85 = vpack.c.b16 %v77, %v76
  %94 = vmatprep.subr.bf16.mxu0 0
  %95 = vmatpush1.bf16.msra.mxu0 %v78
  %96 = vmatprep.subr.bf16.mxu0 0
  %97 = vmatpush1.bf16.msra.mxu0 %v79
  %98 = vmatprep.subr.bf16.mxu0 0
  %99 = vmatpush1.bf16.msra.mxu0 %v80
  %100 = vmatprep.subr.bf16.mxu0 0
  %101 = vmatpush1.bf16.msra.mxu0 %v81
  %102 = vmatprep.subr.bf16.mxu0 0
  %103 = vmatpush1.bf16.msra.mxu0 %v82
  %104 = vmatprep.subr.bf16.mxu0 0
  %105 = vmatpush1.bf16.msra.mxu0 %v83
  %106 = vmatprep.subr.bf16.mxu0 0
  %107 = vmatpush1.bf16.msra.mxu0 %v84
  %108 = vmatprep.subr.bf16.mxu0 0
  %109 = vmatpush1.bf16.msra.mxu0 %v85
  %110 = vmatprep.subr.bf16.mxu0 0
  %111 = vmatpush1.bf16.msra.mxu0 0
  %112 = vmatprep.subr.bf16.mxu0 0
  %113 = vmatpush1.bf16.msra.mxu0 0
  %114 = vmatprep.subr.bf16.mxu0 0
  %115 = vmatpush1.bf16.msra.mxu0 0
  %116 = vmatprep.subr.bf16.mxu0 0
  %117 = vmatpush1.bf16.msra.mxu0 0
  %118 = vmatprep.subr.bf16.mxu0 0
  %119 = vmatpush1.bf16.msra.mxu0 0
  %120 = vmatprep.subr.bf16.mxu0 0
  %121 = vmatpush1.bf16.msra.mxu0 0
  %122 = vmatprep.subr.bf16.mxu0 0
  %123 = vmatpush1.bf16.msra.mxu0 0
  %124 = vmatprep.subr.bf16.mxu0 0
  %125 = vmatpush1.bf16.msra.mxu0 0
  %126 = vmatprep.mubr.bf16.mxu0 0
  %127 = vmatmul.mubr.bf16.gmra.mrb[0].mxu0 %v44
  %v128 = vpop.f32.mrb[0].mxu0
  %v129 = vadd.f32 %v38, %v128
  %v130 = vpop.f32.mrb[0].mxu0
  %v131 = vpop.f32.mrb[0].mxu0
  %v132 = vadd.f32 %v38, %v131
  %v133 = vpop.f32.mrb[0].mxu0
  %134 = vdwg.mxu0
  %v135 = vpack.c.bf16 %v132, %v129
  %v137 = vunpack.c.l.b16 %v135
  %v138 = vunpack.c.h.b16 %v135
  %v139 = vpack.c.b16 %v137, %v137
  %v140 = vpack.c.b16 %v138, %v138
  %143 = vst [vmem:[%s3] sm:$0xf] %v139
  %144 = vst [vmem:[%s3 + $0x4] sm:$0xf] %v140
  // Predicated region
  $region14: #{_lambda_.1} parent=0 // pred_check
    _
  $region15: #{_lambda_.1} parent=0 // pred_check_branch
    %146 = sbr.rel (0) target = $region17
  $region16: #{_lambda_.1} parent=0 // pred_region
    _
  $region17: #{_lambda_.1} parent=0 // pred_fallthru
    _
  // Predicated region
  $region18: #{_lambda_.1} parent=0 // pred_check
    _
  $region19: #{_lambda_.1} parent=0 // pred_check_branch
    %148 = sbr.rel (0) target = $region21
  $region20: #{_lambda_.1} parent=0 // pred_region
    _
  $region21: #{_lambda_.1} parent=0 // pred_fallthru
    _

</llo_original>
